<compile_context>
chip_gen: v5e
topology: v5e:2x2
jax: 0.10.0
libtpu: 0.0.40
codegen_flags: <defaults>
</compile_context>

<pallas_src>
import math
import functools

import jax
import jax.numpy as jnp
from jax.experimental import pallas as pl
from jax.experimental.pallas import tpu as pltpu


def _round_up(x, m):
    return (x + m - 1) // m * m


def speaker_criterion_kernel(x_ref, w_ref, b_ref, lbl_ref, loss_ref, acc_ref,
                             *, batch_size):
    i = pl.program_id(0)
    tile_b = x_ref.shape[0]

    @pl.when(i == 0)
    def _init():
        loss_ref[...] = jnp.zeros_like(loss_ref)
        acc_ref[...] = jnp.zeros_like(acc_ref)

    # Linear classifier on the MXU: (tile_b, Dp) @ (Dp, Cp), f32 accumulation.
    logits = jnp.dot(x_ref[...], w_ref[...], preferred_element_type=jnp.float32)
    logits = logits + b_ref[...]              # padded classes carry a -1e30 bias

    cp = logits.shape[-1]
    cls = jax.lax.broadcasted_iota(jnp.int32, logits.shape, 1)
    lbl = lbl_ref[...]                        # (tile_b, 1) int32

    # Cross entropy via numerically-stable log-sum-exp.
    m = jnp.max(logits, axis=-1, keepdims=True)
    lse = jnp.log(jnp.sum(jnp.exp(logits - m), axis=-1, keepdims=True)) + m
    tgt = jnp.sum(jnp.where(cls == lbl, logits, 0.0), axis=-1, keepdims=True)
    per_row_loss = lse - tgt                  # (tile_b, 1)

    # First-match argmax (== torch .max(1)[1]) using f32 lane reductions only.
    clsf = cls.astype(jnp.float32)
    cand = jnp.where(logits == m, clsf, float(cp))
    pred = jnp.min(cand, axis=-1, keepdims=True)           # (tile_b, 1)
    correct = (pred == lbl.astype(jnp.float32)).astype(jnp.float32)

    # Mask padded rows, reduce to (1, 1), pre-scale by 1/B and accumulate.
    row = i * tile_b + jax.lax.broadcasted_iota(jnp.int32, (tile_b, 1), 0)
    valid = (row < batch_size).astype(jnp.float32)
    inv_n = 1.0 / float(batch_size)
    loss_ref[...] += jnp.sum(per_row_loss * valid, axis=0, keepdims=True) * inv_n
    acc_ref[...] += jnp.sum(correct * valid, axis=0, keepdims=True) * inv_n


def speaker_criterion(c_feature, other_encoded, label, weight, bias, *,
                      compute_accuracy=None, tile_b=256, use_bf16=True):
    """Fused SpeakerCriterion forward.

    c_feature: (B, S, D) f32; other_encoded: unused (kept to mirror the torch forward);
    label: (B,) int; weight: (nSpeakers, D) torch nn.Linear layout; bias: (nSpeakers,).
    Returns (loss, acc), each of shape (1, 1) float32.
    """
    del other_encoded, compute_accuracy          # unused by the PyTorch module as well
    B, S, D = c_feature.shape
    n_cls = weight.shape[0]
    assert weight.shape == (n_cls, D)

    x = c_feature[:, -1, :]                      # (B, D), last timestep

    # Lane-dense padding: contraction dim and class dim up to multiples of 128.
    Dp = _round_up(D, 128)
    Cp = _round_up(n_cls, 128)
    tile_b = min(tile_b, _round_up(B, 8))        # multiple of 8, no bigger than needed
    Bp = _round_up(B, tile_b)
    grid = Bp // tile_b

    mm_dtype = jnp.bfloat16 if use_bf16 else jnp.float32
    xp = jnp.zeros((Bp, Dp), mm_dtype).at[:B, :D].set(x.astype(mm_dtype))
    wp = jnp.zeros((Dp, Cp), mm_dtype).at[:D, :n_cls].set(weight.T.astype(mm_dtype))
    bp = jnp.full((1, Cp), -1e30, jnp.float32).at[0, :n_cls].set(bias.astype(jnp.float32))
    lblp = jnp.zeros((Bp, 1), jnp.int32).at[:B, 0].set(label.astype(jnp.int32))

    # Explicit VMEM budget (double-buffered tiles + resident weights + f32 intermediates).
    itemsize = 2 if use_bf16 else 4
    vmem_est = (2 * tile_b * Dp * itemsize       # x tiles (double buffered)
                + 2 * Dp * Cp * itemsize         # resident weight
                + 2 * Cp * 4 + 2 * tile_b * 4    # bias + labels
                + 6 * tile_b * Cp * 4)           # logits / exp / masks in f32
    vmem_limit = int(min(64 * 2 ** 20, max(16 * 2 ** 20, 2 * vmem_est)))

    cost = pl.CostEstimate(
        flops=2 * Bp * Dp * Cp,
        transcendentals=Bp * Cp + Bp,
        bytes_accessed=xp.nbytes + wp.nbytes + bp.nbytes + lblp.nbytes + 8,
    )

    kernel = functools.partial(speaker_criterion_kernel, batch_size=B)

    loss, acc = pl.pallas_call(
        kernel,
        out_shape=(jax.ShapeDtypeStruct((1, 1), jnp.float32),
                   jax.ShapeDtypeStruct((1, 1), jnp.float32)),
        grid_spec=pltpu.PrefetchScalarGridSpec(
            num_scalar_prefetch=0,
            grid=(grid,),
            in_specs=[
                pl.BlockSpec((tile_b, Dp), lambda i: (i, 0)),   # x row tile
                pl.BlockSpec((Dp, Cp), lambda i: (0, 0)),       # W (VMEM-resident)
                pl.BlockSpec((1, Cp), lambda i: (0, 0)),        # bias (f32, -1e30 pad)
                pl.BlockSpec((tile_b, 1), lambda i: (i, 0)),    # labels
            ],
            out_specs=[
                pl.BlockSpec((1, 1), lambda i: (0, 0)),         # loss accumulator
                pl.BlockSpec((1, 1), lambda i: (0, 0)),         # acc accumulator
            ],
        ),
        compiler_params=pltpu.CompilerParams(
            # The batch-tile axis accumulates into the same (1,1) outputs -> sequential.
            dimension_semantics=("arbitrary",),
            vmem_limit_bytes=vmem_limit,
        ),
        cost_estimate=cost,
    )(xp, wp, bp, lblp)

    return loss, acc


def speaker_criterion_ref(c_feature, other_encoded, label, weight, bias, *, use_bf16=True):
    """Pure-JAX reference (matmul done in the same MXU dtype as the kernel)."""
    del other_encoded
    x = c_feature[:, -1, :]
    if use_bf16:
        logits = jnp.dot(x.astype(jnp.bfloat16), weight.T.astype(jnp.bfloat16),
                         preferred_element_type=jnp.float32) + bias
    else:
        logits = x @ weight.T + bias
    logp = jax.nn.log_softmax(logits, axis=-1)
    loss = -jnp.take_along_axis(logp, label[:, None], axis=-1).mean()
    acc = (jnp.argmax(logits, axis=-1) == label).astype(jnp.float32).mean()
    return loss.reshape(1, 1), acc.reshape(1, 1)


if __name__ == "__main__":
    # Small shapes consistent with the module: (batch, seq, dimEncoder) features,
    # nSpeakers-way classifier, integer speaker labels.
    B, S = 8, 16
    dim_encoder, n_speakers = 32, 40

    key = jax.random.PRNGKey(0)
    kx, ko, kw, kb, kl = jax.random.split(key, 5)

    c_feature = jax.random.normal(kx, (B, S, dim_encoder), dtype=jnp.float32)
    other_encoded = jax.random.normal(ko, (B, S, dim_encoder), dtype=jnp.float32)  # unused

    # nn.Linear default init: U(-1/sqrt(fan_in), 1/sqrt(fan_in)) for weight and bias.
    bound = 1.0 / math.sqrt(dim_encoder)
    weight = jax.random.uniform(kw, (n_speakers, dim_encoder), jnp.float32, -bound, bound)
    bias = jax.random.uniform(kb, (n_speakers,), jnp.float32, -bound, bound)
    label = jax.random.randint(kl, (B,), 0, n_speakers)

    loss, acc = speaker_criterion(c_feature, other_encoded, label, weight, bias)
    loss, acc = jax.block_until_ready((loss, acc))

    loss_ref, acc_ref = speaker_criterion_ref(c_feature, other_encoded, label, weight, bias)

    assert loss.shape == (1, 1) and acc.shape == (1, 1)
    assert jnp.allclose(loss, loss_ref, atol=1e-4, rtol=1e-4), (loss, loss_ref)
    assert jnp.allclose(acc, acc_ref, atol=1e-6), (acc, acc_ref)

    print("KERNEL_OK")
</pallas_src>

<mosaic_0001>
module attributes {stable_mosaic.version = 11 : i64} {
  func.func @speaker_criterion_kernel(%arg0: i32, %arg1: memref<8x128xbf16, #tpu.memory_space<vmem>>, %arg2: memref<128x128xbf16, #tpu.memory_space<vmem>>, %arg3: memref<1x128xf32, #tpu.memory_space<vmem>>, %arg4: memref<8x1xi32, #tpu.memory_space<vmem>>, %arg5: memref<1x1xf32, #tpu.memory_space<vmem>>, %arg6: memref<1x1xf32, #tpu.memory_space<vmem>>) attributes {dimension_semantics = [#tpu.dimension_semantics<arbitrary>], iteration_bounds = array<i64: 1>, scalar_prefetch = 0 : i64, scratch_operands = 0 : i64, tpu.core_type = #tpu.core_type<tc>, window_params = [{transform_indices = @transform_0, window_bounds = array<i64: 8, 128>}, {pipeline_mode = #tpu.pipeline_mode<synchronous>, transform_indices = @transform_1, window_bounds = array<i64: 128, 128>}, {pipeline_mode = #tpu.pipeline_mode<synchronous>, transform_indices = @transform_2, window_bounds = array<i64: 1, 128>}, {transform_indices = @transform_3, window_bounds = array<i64: 8, 1>}, {pipeline_mode = #tpu.pipeline_mode<synchronous>, transform_indices = @transform_4, window_bounds = array<i64: 1, 1>}, {pipeline_mode = #tpu.pipeline_mode<synchronous>, transform_indices = @transform_5, window_bounds = array<i64: 1, 1>}]} {
    %c0_i32 = arith.constant 0 : i32
    %0 = arith.cmpi eq, %arg0, %c0_i32 : i32
    %1 = arith.extui %0 : i1 to i32
    %c0_i32_0 = arith.constant 0 : i32
    %2 = arith.cmpi ne, %1, %c0_i32_0 : i32
    scf.if %2 {
      %cst_27 = arith.constant 0.000000e+00 : f32
      %62 = vector.broadcast %cst_27 : f32 to vector<1x1xf32>
      %c0_28 = arith.constant 0 : index
      %c0_29 = arith.constant 0 : index
      %63 = vector.load %arg5[%c0_28, %c0_29] : memref<1x1xf32, #tpu.memory_space<vmem>>, vector<1x1xf32>
      tpu.vector_store %arg5[%c0_28, %c0_29], %62 {strides = array<i32>} : memref<1x1xf32, #tpu.memory_space<vmem>>, vector<1x1xf32>,
      %cst_30 = arith.constant 0.000000e+00 : f32
      %64 = vector.broadcast %cst_30 : f32 to vector<1x1xf32>
      %c0_31 = arith.constant 0 : index
      %c0_32 = arith.constant 0 : index
      %65 = vector.load %arg6[%c0_31, %c0_32] : memref<1x1xf32, #tpu.memory_space<vmem>>, vector<1x1xf32>
      tpu.vector_store %arg6[%c0_31, %c0_32], %64 {strides = array<i32>} : memref<1x1xf32, #tpu.memory_space<vmem>>, vector<1x1xf32>,
    } else {
    }
    %c0 = arith.constant 0 : index
    %c0_1 = arith.constant 0 : index
    %3 = vector.load %arg1[%c0, %c0_1] : memref<8x128xbf16, #tpu.memory_space<vmem>>, vector<8x128xbf16>
    %c0_2 = arith.constant 0 : index
    %c0_3 = arith.constant 0 : index
    %4 = vector.load %arg2[%c0_2, %c0_3] : memref<128x128xbf16, #tpu.memory_space<vmem>>, vector<128x128xbf16>
    %cst = arith.constant dense<0.000000e+00> : vector<8x128xf32>
    %5 = tpu.matmul %3, %4, %cst {dimension_numbers = #tpu.dot_dimension_numbers<[1], [0], [0], [1], [0, 0, 1, 1], [], []>} : vector<8x128xbf16>, vector<128x128xbf16>, vector<8x128xf32> -> vector<8x128xf32>
    %c0_4 = arith.constant 0 : index
    %c0_5 = arith.constant 0 : index
    %6 = vector.load %arg3[%c0_4, %c0_5] : memref<1x128xf32, #tpu.memory_space<vmem>>, vector<1x128xf32>
    %7 = vector.broadcast %6 : vector<1x128xf32> to vector<8x128xf32>
    %8 = arith.addf %5, %7 : vector<8x128xf32>
    %9 = tpu.iota {dimensions = array<i32: 1>} : vector<8x128xi32>
    %c0_6 = arith.constant 0 : index
    %c0_7 = arith.constant 0 : index
    %10 = vector.load %arg4[%c0_6, %c0_7] : memref<8x1xi32, #tpu.memory_space<vmem>>, vector<8x1xi32>
    %cst_8 = arith.constant dense<0xFF800000> : vector<8xf32>
    %11 = vector.multi_reduction <maximumf>, %8, %cst_8 [1] : vector<8x128xf32> to vector<8xf32>
    %12 = vector.shape_cast %11 : vector<8xf32> to vector<8x1xf32>
    %13 = vector.broadcast %12 : vector<8x1xf32> to vector<8x128xf32>
    %14 = arith.subf %8, %13 : vector<8x128xf32>
    %15 = math.exp %14 : vector<8x128xf32>
    %cst_9 = arith.constant dense<0.000000e+00> : vector<8xf32>
    %16 = vector.multi_reduction <add>, %15, %cst_9 [1] : vector<8x128xf32> to vector<8xf32>
    %17 = vector.shape_cast %16 : vector<8xf32> to vector<8x1xf32>
    %18 = math.log %17 : vector<8x1xf32>
    %19 = arith.addf %18, %12 : vector<8x1xf32>
    %20 = vector.broadcast %10 : vector<8x1xi32> to vector<8x128xi32>
    %21 = arith.cmpi eq, %9, %20 : vector<8x128xi32>
    %cst_10 = arith.constant 0.000000e+00 : f32
    %22 = vector.broadcast %cst_10 : f32 to vector<8x128xf32>
    %23 = arith.select %21, %8, %22 : vector<8x128xi1>, vector<8x128xf32>
    %cst_11 = arith.constant dense<0.000000e+00> : vector<8xf32>
    %24 = vector.multi_reduction <add>, %23, %cst_11 [1] : vector<8x128xf32> to vector<8xf32>
    %25 = vector.shape_cast %24 : vector<8xf32> to vector<8x1xf32>
    %26 = arith.subf %19, %25 : vector<8x1xf32>
    %27 = arith.sitofp %9 : vector<8x128xi32> to vector<8x128xf32>
    %28 = vector.broadcast %12 : vector<8x1xf32> to vector<8x128xf32>
    %29 = arith.cmpf oeq, %8, %28 : vector<8x128xf32>
    %cst_12 = arith.constant 1.280000e+02 : f32
    %30 = vector.broadcast %cst_12 : f32 to vector<8x128xf32>
    %31 = arith.select %29, %27, %30 : vector<8x128xi1>, vector<8x128xf32>
    %cst_13 = arith.constant dense<0x7F800000> : vector<8xf32>
    %32 = vector.multi_reduction <minimumf>, %31, %cst_13 [1] : vector<8x128xf32> to vector<8xf32>
    %33 = vector.shape_cast %32 : vector<8xf32> to vector<8x1xf32>
    %34 = arith.sitofp %10 : vector<8x1xi32> to vector<8x1xf32>
    %35 = arith.cmpf oeq, %33, %34 : vector<8x1xf32>
    %36 = arith.extui %35 : vector<8x1xi1> to vector<8x1xi32>
    %37 = arith.sitofp %36 : vector<8x1xi32> to vector<8x1xf32>
    %c8_i32 = arith.constant 8 : i32
    %38 = arith.muli %arg0, %c8_i32 : i32
    %39 = tpu.iota {dimensions = array<i32: 0>} : vector<8x1xi32>
    %40 = vector.broadcast %38 : i32 to vector<8x1xi32>
    %41 = arith.addi %40, %39 : vector<8x1xi32>
    %c8_i32_14 = arith.constant 8 : i32
    %42 = vector.broadcast %c8_i32_14 : i32 to vector<8x1xi32>
    %43 = arith.cmpi slt, %41, %42 : vector<8x1xi32>
    %44 = arith.extui %43 : vector<8x1xi1> to vector<8x1xi32>
    %45 = arith.sitofp %44 : vector<8x1xi32> to vector<8x1xf32>
    %c0_15 = arith.constant 0 : index
    %c0_16 = arith.constant 0 : index
    %46 = vector.load %arg5[%c0_15, %c0_16] : memref<1x1xf32, #tpu.memory_space<vmem>>, vector<1x1xf32>
    %47 = arith.mulf %26, %45 : vector<8x1xf32>
    %cst_17 = arith.constant dense<0.000000e+00> : vector<1xf32>
    %48 = vector.multi_reduction <add>, %47, %cst_17 [0] : vector<8x1xf32> to vector<1xf32>
    %49 = vector.shape_cast %48 : vector<1xf32> to vector<1x1xf32>
    %cst_18 = arith.constant 1.250000e-01 : f32
    %50 = vector.broadcast %cst_18 : f32 to vector<1x1xf32>
    %51 = arith.mulf %49, %50 : vector<1x1xf32>
    %52 = arith.addf %46, %51 : vector<1x1xf32>
    %c0_19 = arith.constant 0 : index
    %c0_20 = arith.constant 0 : index
    %53 = vector.load %arg5[%c0_19, %c0_20] : memref<1x1xf32, #tpu.memory_space<vmem>>, vector<1x1xf32>
    tpu.vector_store %arg5[%c0_19, %c0_20], %52 {strides = array<i32>} : memref<1x1xf32, #tpu.memory_space<vmem>>, vector<1x1xf32>,
    %c0_21 = arith.constant 0 : index
    %c0_22 = arith.constant 0 : index
    %54 = vector.load %arg6[%c0_21, %c0_22] : memref<1x1xf32, #tpu.memory_space<vmem>>, vector<1x1xf32>
    %55 = arith.mulf %37, %45 : vector<8x1xf32>
    %cst_23 = arith.constant dense<0.000000e+00> : vector<1xf32>
    %56 = vector.multi_reduction <add>, %55, %cst_23 [0] : vector<8x1xf32> to vector<1xf32>
    %57 = vector.shape_cast %56 : vector<1xf32> to vector<1x1xf32>
    %cst_24 = arith.constant 1.250000e-01 : f32
    %58 = vector.broadcast %cst_24 : f32 to vector<1x1xf32>
    %59 = arith.mulf %57, %58 : vector<1x1xf32>
    %60 = arith.addf %54, %59 : vector<1x1xf32>
    %c0_25 = arith.constant 0 : index
    %c0_26 = arith.constant 0 : index
    %61 = vector.load %arg6[%c0_25, %c0_26] : memref<1x1xf32, #tpu.memory_space<vmem>>, vector<1x1xf32>
    tpu.vector_store %arg6[%c0_25, %c0_26], %60 {strides = array<i32>} : memref<1x1xf32, #tpu.memory_space<vmem>>, vector<1x1xf32>,
    return
  }
  func.func @transform_0(%arg0: i32) -> (i32, i32) {
    %c0_i32 = arith.constant 0 : i32
    %c0_i32_0 = arith.constant 0 : i32
    return %arg0, %c0_i32 : i32, i32
  }
  func.func @transform_1(%arg0: i32) -> (i32, i32) {
    %c0_i32 = arith.constant 0 : i32
    %c0_i32_0 = arith.constant 0 : i32
    %c0_i32_1 = arith.constant 0 : i32
    return %c0_i32, %c0_i32_0 : i32, i32
  }
  func.func @transform_2(%arg0: i32) -> (i32, i32) {
    %c0_i32 = arith.constant 0 : i32
    %c0_i32_0 = arith.constant 0 : i32
    %c0_i32_1 = arith.constant 0 : i32
    return %c0_i32, %c0_i32_0 : i32, i32
  }
  func.func @transform_3(%arg0: i32) -> (i32, i32) {
    %c0_i32 = arith.constant 0 : i32
    %c0_i32_0 = arith.constant 0 : i32
    return %arg0, %c0_i32 : i32, i32
  }
  func.func @transform_4(%arg0: i32) -> (i32, i32) {
    %c0_i32 = arith.constant 0 : i32
    %c0_i32_0 = arith.constant 0 : i32
    %c0_i32_1 = arith.constant 0 : i32
    return %c0_i32, %c0_i32_0 : i32, i32
  }
  func.func @transform_5(%arg0: i32) -> (i32, i32) {
    %c0_i32 = arith.constant 0 : i32
    %c0_i32_0 = arith.constant 0 : i32
    %c0_i32_1 = arith.constant 0 : i32
    return %c0_i32, %c0_i32_0 : i32, i32
  }
}

</mosaic_0001>

<llo_original>
// kernel: tpu_custom_call.1
$region0: #{tpu_custom_call.1}
  #allocation0 [shape = 'u32[]', space=smem, size = 0x4, offset = 0x4, fixed_abs, tag = 'smem constant byte address 0x4 - core index']
  #allocation1 [shape = 'u32[72,128]{1,0:T(1,128)}', space=vmem, size = 0x9000, scoped, tag = 'internal scratch']
  %s0 = inlined_call_operand.vmem [shape: bf16[8,128], index: 0, kind: input, shape index: {}]
  %s1 = inlined_call_operand.hbm [shape: bf16[128,128], index: 1, kind: input, shape index: {}]
  %s2 = inlined_call_operand.vmem [shape: f32[1,128], index: 2, kind: input, shape index: {}]
  %s3 = inlined_call_operand.vmem [shape: s32[8,1], index: 3, kind: input, shape index: {}]
  %s4 = inlined_call_operand.hbm [shape: f32[1,1], index: 4, kind: output, shape index: {0}]
  %s5 = inlined_call_operand.hbm [shape: f32[1,1], index: 5, kind: output, shape index: {1}]
  %6 = xla_tuple %s4, %s5
  %s7 = sld [smem:[#allocation0]]
  $region42: #{tpu_custom_call.1} parent=0
    _
  %s9 = ssub.s32 1, %s7
  %s10 = scalar_select 0, %s9, %s7
  $region1: #{tpu_custom_call.1} parent=0
    #allocation2 [shape = 'u8[32768]{0}', space=vmem, size = 0x8000, scoped, tag = 'input window, operand 1, single buffered']
    #allocation3 [shape = 's32[1]{0}', space=sflag, size = 0x4, scoped, tag = 'scoped memory for tpu_custom_call.1']
    #allocation4 [shape = 's32[1]{0}', space=sflag, size = 0x4, scoped, tag = 'scoped memory for tpu_custom_call.1']
    #allocation5 [shape = 'u8[512]{0}', space=vmem, size = 0x400, scoped, tag = 'output window, operand 0, single buffered']
    #allocation6 [shape = 'u8[512]{0}', space=vmem, size = 0x400, scoped, tag = 'output window, operand 1, single buffered']
    #allocation7 [shape = 's32[1]{0}', space=sflag, size = 0x4, scoped, tag = 'scoped memory for tpu_custom_call.1']
    %11 = vsyncpa [#allocation3], 0
    %12 = vsyncpa [#allocation4], 0
    %13 = vsyncpa [#allocation7], 0
    // Predicated region
    $region2: #{tpu_custom_call.1} parent=1 // pred_check
      _
    $region3: #{tpu_custom_call.1} parent=1 // pred_check_branch
      %15 = sbr.rel (0) target = $region5
    $region4: #{tpu_custom_call.1} parent=1 // pred_region
      _
    $region5: #{tpu_custom_call.1} parent=1 // pred_fallthru
      _
    // Predicated region
    $region6: #{tpu_custom_call.1} parent=1 // pred_check
      _
    $region7: #{tpu_custom_call.1} parent=1 // pred_check_branch
      %17 = sbr.rel (0) target = $region9
    $region8: #{tpu_custom_call.1} parent=1 // pred_region
      %19 = vsyncadd [#allocation3], 0
      %s20 = sshll.u32 %s1, 4
      %s21 = int_to_ptr.hbm [resolvable:$true] %s20
      %s22 = sshll.u32 [#allocation2], 4
      %s23 = int_to_ptr.vmem [resolvable:$true] %s22
      %28 = dma.hbm_to_vmem [thread:$0]  %s21, 1024, %s23, [#allocation3], 64, 64, 4
    $region9: #{tpu_custom_call.1} parent=1 // pred_fallthru
      _
    // Predicated region
    $region10: #{tpu_custom_call.1} parent=1 // pred_check
      _
    $region11: #{tpu_custom_call.1} parent=1 // pred_check_branch
      %30 = sbr.rel (0) target = $region13
    $region12: #{tpu_custom_call.1} parent=1 // pred_region
      _
    $region13: #{tpu_custom_call.1} parent=1 // pred_fallthru
      _
    // Predicated region
    $region14: #{tpu_custom_call.1} parent=1 // pred_check
      _
    $region15: #{tpu_custom_call.1} parent=1 // pred_check_branch
      %32 = sbr.rel (0) target = $region17
    $region16: #{tpu_custom_call.1} parent=1 // pred_region
      _
    $region17: #{tpu_custom_call.1} parent=1 // pred_fallthru
      _
    // Predicated region
    $region18: #{tpu_custom_call.1} parent=1 // pred_check
      _
    $region19: #{tpu_custom_call.1} parent=1 // pred_check_branch
      %34 = sbr.rel (0) target = $region21
    $region20: #{tpu_custom_call.1} parent=1 // pred_region
      %36 = dma.done [#allocation3], 1024
    $region21: #{tpu_custom_call.1} parent=1 // pred_fallthru
      _
    %p37 = scmp.eq.s32.totalorder 0, 0
    // Predicated region
    $region22: #{tpu_custom_call.1} parent=1 // pred_check
      %p38 = pneg %p37
    $region23: #{tpu_custom_call.1} parent=1 // pred_check_branch
      %40 = sbr.rel (%p38) target = $region25
    $region24: #{tpu_custom_call.1} parent=1 // pred_region
      %vm41 = vcmask 0
      %42 = vst.msk [vmem:[#allocation5] sm:$0x1] %vm41, 0.0
      %43 = vst.msk [vmem:[#allocation6] sm:$0x1] %vm41, 0.0
    $region25: #{tpu_custom_call.1} parent=1 // pred_fallthru
      _
    %v44 = vld [vmem:[%s0] sm:$0xf]
    %v45 = vld [vmem:[#allocation2] sm:$0xf]
    %v46 = vld [vmem:[#allocation2 + $0x4] sm:$0xf]
    %v47 = vld [vmem:[#allocation2 + $0x8] sm:$0xf]
    %v48 = vld [vmem:[#allocation2 + $0xc] sm:$0xf]
    %v49 = vld [vmem:[#allocation2 + $0x10] sm:$0xf]
    %v50 = vld [vmem:[#allocation2 + $0x14] sm:$0xf]
    %v51 = vld [vmem:[#allocation2 + $0x18] sm:$0xf]
    %v52 = vld [vmem:[#allocation2 + $0x1c] sm:$0xf]
    %v53 = vld [vmem:[#allocation2 + $0x20] sm:$0xf]
    %v54 = vld [vmem:[#allocation2 + $0x24] sm:$0xf]
    %v55 = vld [vmem:[#allocation2 + $0x28] sm:$0xf]
    %v56 = vld [vmem:[#allocation2 + $0x2c] sm:$0xf]
    %v57 = vld [vmem:[#allocation2 + $0x30] sm:$0xf]
    %v58 = vld [vmem:[#allocation2 + $0x34] sm:$0xf]
    %v59 = vld [vmem:[#allocation2 + $0x38] sm:$0xf]
    %v60 = vld [vmem:[#allocation2 + $0x3c] sm:$0xf]
    %v61 = vld [vmem:[%s2] sm:$0x1]
    %v63 = vperm.slane %v61, 0
    %v81 = vunpack.c.l.b16 %v45
    %v82 = vunpack.c.l.b16 %v46
    %v83 = vunpack.c.l.b16 %v47
    %v84 = vunpack.c.l.b16 %v48
    %v85 = vunpack.c.l.b16 %v49
    %v86 = vunpack.c.l.b16 %v50
    %v87 = vunpack.c.l.b16 %v51
    %v88 = vunpack.c.l.b16 %v52
    %v89 = vunpack.c.l.b16 %v53
    %v90 = vunpack.c.l.b16 %v54
    %v91 = vunpack.c.l.b16 %v55
    %v92 = vunpack.c.l.b16 %v56
    %v93 = vunpack.c.l.b16 %v57
    %v94 = vunpack.c.l.b16 %v58
    %v95 = vunpack.c.l.b16 %v59
    %v96 = vunpack.c.l.b16 %v60
    %v97 = vpack.c.b16 %v82, %v81
    %v98 = vpack.c.b16 %v84, %v83
    %v99 = vpack.c.b16 %v86, %v85
    %v100 = vpack.c.b16 %v88, %v87
    %v101 = vpack.c.b16 %v90, %v89
    %v102 = vpack.c.b16 %v92, %v91
    %v103 = vpack.c.b16 %v94, %v93
    %v104 = vpack.c.b16 %v96, %v95
    %113 = vmatpush.bf16.msra.mxu0 %v104
    %114 = vmatpush.bf16.msra.mxu0 %v103
    %115 = vmatpush.bf16.msra.mxu0 %v102
    %116 = vmatpush.bf16.msra.mxu0 %v101
    %117 = vmatpush.bf16.msra.mxu0 %v100
    %118 = vmatpush.bf16.msra.mxu0 %v99
    %119 = vmatpush.bf16.msra.mxu0 %v98
    %120 = vmatpush.bf16.msra.mxu0 %v97
    %121 = vmatmul.bf16.gmra.mxu0 %v44
    %v122 = vpop.f32.mrf.mxu0
    %v123 = vadd.f32 %v63, %v122
    %v124 = vpop.f32.mrf.mxu0
    %125 = vdwg.mxu0
    %v126 = vlaneseq
    %v127 = vand.u32 %v126, 127
    %v128 = vld [vmem:[%s3] sm:$0xff]
    %129 = vmax.xlane.f32.xlu0 %v123
    %v130 = vpop.xlane.xlu0 %129
    %v131 = vsub.f32 %v123, %v130
    %v132 = vmul.f32 %v131, 1.442695
    %v133 = vpow.pop %v132
    %134 = vadd.xlane.f32.xlu0 %v133
    %v135 = vpop.xlane.xlu0 %134
    %v136 = vlog2.pop %v135
    %v137 = vmul.f32 %v136, 0.6931472
    %v138 = vadd.f32 %v137, %v130
    %139 = vset.pattern.permute.xlu0 0
    %140 = vperm.xlu0 %139, %v128
    %v141 = vpop.permute.xlu0 %140
    %vm142 = vcmp.eq.s32.totalorder %v127, %v141
    %v143 = vsel %vm142, %v123, 0.0
    %144 = vadd.xlane.f32.xlu0 %v143
    %v145 = vpop.xlane.xlu0 %144
    %v146 = vsub.f32 %v138, %v145
    %v147 = vcvt.s32.f32 %v127
    %vm148 = vcmp.eq.f32.partialorder %v123, %v130
    %v149 = vsel %vm148, %v147, 128.0
    %150 = vmin.xlane.f32.xlu0 %v149
    %v151 = vpop.xlane.xlu0 %150
    %v152 = vcvt.s32.f32 %v128
    %vm153 = vcmp.eq.f32.partialorder %v151, %v152
    %v154 = vsel %vm153, 1, 0
    %v155 = vcvt.s32.f32 %v154
    %s156 = smul.u32 0, 8
    %v157 = vlaneseq
    %v158 = vshrl.u32 %v157, 7
    %v159 = vstv %s156
    %v160 = vadd.s32 %v159, %v158
    %vm161 = vcmp.lt.s32.totalorder %v160, 8
    %v162 = vsel %vm161, 1, 0
    %v163 = vcvt.s32.f32 %v162
    %v164 = vld [vmem:[#allocation5] sm:$0x1]
    %v165 = vmul.f32 %v146, %v163
    %v166 = vrot.slane %v165, 4
    %v167 = vadd.f32 %v165, %v166
    %v168 = vrot.slane %v167, 2
    %v169 = vadd.f32 %v167, %v168
    %v170 = vrot.slane %v169, 1
    %v171 = vadd.f32 %v169, %v170
    %v172 = vmul.f32 %v171, 0.125
    %v173 = vadd.f32 %v164, %v172
    %vm174 = vcmask 0
    %175 = vst.msk [vmem:[#allocation5] sm:$0x1] %vm174, %v173
    %v176 = vld [vmem:[#allocation6] sm:$0x1]
    %v177 = vmul.f32 %v155, %v163
    %vm178 = vcmask 7168
    %v179 = vsel %vm178, %v177, 0.0
    %v180 = vrot.slane %v179, 4
    %v181 = vadd.f32 %v179, %v180
    %v182 = vrot.slane %v181, 2
    %v183 = vadd.f32 %v181, %v182
    %v184 = vrot.slane %v183, 1
    %v185 = vadd.f32 %v183, %v184
    %v186 = vmul.f32 %v185, 0.125
    %v187 = vadd.f32 %v176, %v186
    %188 = vst.msk [vmem:[#allocation6] sm:$0x1] %vm174, %v187
    // Predicated region
    $region26: #{tpu_custom_call.1} parent=1 // pred_check
      _
    $region27: #{tpu_custom_call.1} parent=1 // pred_check_branch
      %190 = sbr.rel (0) target = $region29
    $region28: #{tpu_custom_call.1} parent=1 // pred_region
      %192 = vsyncadd [#allocation4], 0
      %s194 = sshll.u32 [#allocation5], 4
      %s195 = int_to_ptr.vmem [resolvable:$true] %s194
      %s196 = sshll.u32 %s4, 4
      %s197 = int_to_ptr.hbm [resolvable:$true] %s196
      %199 = dma.vmem_to_hbm [thread:$0]  %s195, 16, %s197, [#allocation4]
    $region29: #{tpu_custom_call.1} parent=1 // pred_fallthru
      _
    // Predicated region
    $region30: #{tpu_custom_call.1} parent=1 // pred_check
      _
    $region31: #{tpu_custom_call.1} parent=1 // pred_check_branch
      %201 = sbr.rel (0) target = $region33
    $region32: #{tpu_custom_call.1} parent=1 // pred_region
      %203 = vsyncadd [#allocation7], 0
      %s205 = sshll.u32 [#allocation6], 4
      %s206 = int_to_ptr.vmem [resolvable:$true] %s205
      %s207 = sshll.u32 %s5, 4
      %s208 = int_to_ptr.hbm [resolvable:$true] %s207
      %210 = dma.vmem_to_hbm [thread:$0]  %s206, 16, %s208, [#allocation7]
    $region33: #{tpu_custom_call.1} parent=1 // pred_fallthru
      _
    // Predicated region
    $region34: #{tpu_custom_call.1} parent=1 // pred_check
      _
    $region35: #{tpu_custom_call.1} parent=1 // pred_check_branch
      %212 = sbr.rel (0) target = $region37
    $region36: #{tpu_custom_call.1} parent=1 // pred_region
      %214 = dma.done [#allocation4], 16
    $region37: #{tpu_custom_call.1} parent=1 // pred_fallthru
      _
    // Predicated region
    $region38: #{tpu_custom_call.1} parent=1 // pred_check
      _
    $region39: #{tpu_custom_call.1} parent=1 // pred_check_branch
      %216 = sbr.rel (0) target = $region41
    $region40: #{tpu_custom_call.1} parent=1 // pred_region
      %218 = dma.done [#allocation7], 16
    $region41: #{tpu_custom_call.1} parent=1 // pred_fallthru
      _
    %219 = vsyncpa [#allocation3], 1
    %220 = vsyncpa [#allocation4], 1
    %221 = vsyncpa [#allocation7], 1

</llo_original>
